<compile_context>
chip_gen: v7x
topology: tpu7x:2x2x1
jax: 0.10.0
libtpu: 0.0.40
codegen_flags: <defaults>
</compile_context>

<pallas_src>
import jax
import jax.numpy as jnp
from jax import lax
from jax.experimental import pallas as pl
from jax.experimental.pallas import tpu as pltpu


def _round_up(x, m):
    return ((x + m - 1) // m) * m


def distmult_kernel(wt_ref, b_ref, r_ref, start_ref, end_ref, out_ref):
    """One row-tile of the DistMult forward (raw logits only).

    wt_ref:    (D, D)  pre-transposed nn.Linear weight (y = x @ wt + b)
    b_ref:     (1, D)  nn.Linear bias
    r_ref:     (1, D)  relation weight (self.weight)
    start_ref: (TN, D) tile of start embeddings
    end_ref:   (TN, D) tile of end embeddings
    out_ref:   (1, TN) raw logit: sum_d tanh(lin(start))_d * r_d * tanh(lin(end))_d
    """
    tn = start_ref.shape[0]

    wt = wt_ref[...]
    b = b_ref[...]
    r = r_ref[...]

    # Fuse the two Linear+tanh matmuls into a single MXU call on (2*TN, D).
    x = jnp.concatenate([start_ref[...], end_ref[...]], axis=0)
    h = jnp.tanh(jnp.dot(x, wt, preferred_element_type=jnp.float32) + b)
    s = h[:tn]
    e = h[tn:]

    # raw[n] = sum_d r_d * s[n, d] * e[n, d], produced lane-major as (1, TN)
    # via an MXU contraction (rhs contracted on its last dim).
    p = s * e
    raw = lax.dot_general(
        r, p,
        dimension_numbers=(((1,), (1,)), ((), ())),
        preferred_element_type=jnp.float32,
    )  # (1, TN)
    out_ref[...] = raw.astype(out_ref.dtype)


def distmult_forward(start, end, lin_w, lin_b, rel_w, *, tile_n=512):
    """Pallas wrapper: pads/tiles over rows, full embed dim per tile."""
    N, D = start.shape
    assert end.shape == (N, D)

    # Large row tile (amortizes ~0.35us/grid-step overhead), multiple of 128
    # for lane-dense output stores, but no larger than the padded row count.
    tile_n = max(128, min(tile_n, _round_up(N, 128)))
    n_pad = _round_up(N, tile_n)
    if n_pad != N:
        pad = ((0, n_pad - N), (0, 0))
        start = jnp.pad(start, pad)
        end = jnp.pad(end, pad)
    grid_n = n_pad // tile_n

    wt = lin_w.T                      # hoist the transpose out of the kernel
    b2 = lin_b.reshape(1, D)
    r2 = rel_w.reshape(1, D)

    cost = pl.CostEstimate(
        flops=2 * (2 * n_pad) * D * D + 2 * n_pad * D,
        transcendentals=2 * n_pad * D,                        # tanh
        bytes_accessed=(2 * n_pad * D + D * D + 2 * D + n_pad) * 4,
    )

    raw = pl.pallas_call(
        distmult_kernel,
        out_shape=jax.ShapeDtypeStruct((grid_n, tile_n), jnp.float32),
        grid_spec=pltpu.PrefetchScalarGridSpec(
            num_scalar_prefetch=0,
            grid=(grid_n,),
            in_specs=[
                pl.BlockSpec((D, D), lambda i: (0, 0)),        # W.T (resident)
                pl.BlockSpec((1, D), lambda i: (0, 0)),        # bias
                pl.BlockSpec((1, D), lambda i: (0, 0)),        # relation weight
                pl.BlockSpec((tile_n, D), lambda i: (i, 0)),   # start tile
                pl.BlockSpec((tile_n, D), lambda i: (i, 0)),   # end tile
            ],
            out_specs=pl.BlockSpec((1, tile_n), lambda i: (i, 0)),
        ),
        compiler_params=pltpu.CompilerParams(
            dimension_semantics=("parallel",),
        ),
        cost_estimate=cost,
    )(wt, b2, r2, start, end)

    # Trivial O(N) tail in XLA, matching the PyTorch semantics exactly
    # (sigmoid, 2-column concat, +1e-32 clamp, log).
    logits = raw.reshape(-1)[:N].reshape(N, 1)
    score = jax.nn.sigmoid(logits)
    return jnp.log(jnp.concatenate([1.0 - score, score], axis=1) + 1e-32)


def distmult_ref(start, end, lin_w, lin_b, rel_w):
    """Pure-JAX reference matching the PyTorch 2-D branch exactly."""
    s = jnp.tanh(start @ lin_w.T + lin_b)
    e = jnp.tanh(end @ lin_w.T + lin_b)
    score = jax.nn.sigmoid(jnp.sum(s * rel_w * e, axis=-1, keepdims=True))
    return jnp.log(jnp.concatenate([1.0 - score, score], axis=1) + 1e-32)


if __name__ == "__main__":
    embed_dim = 32
    N = 16

    key = jax.random.PRNGKey(0)
    k_w, k_b, k_r, k_s, k_e = jax.random.split(key, 5)

    # nn.Linear(embed_dim, embed_dim): weight/bias ~ U(-1/sqrt(D), 1/sqrt(D))
    bound = 1.0 / (embed_dim ** 0.5)
    lin_w = jax.random.uniform(
        k_w, (embed_dim, embed_dim), jnp.float32, minval=-bound, maxval=bound
    )
    lin_b = jax.random.uniform(
        k_b, (embed_dim,), jnp.float32, minval=-bound, maxval=bound
    )
    # self.weight = torch.rand(embed_dim): U(0, 1)
    rel_w = jax.random.uniform(k_r, (embed_dim,), jnp.float32)

    start = jax.random.normal(k_s, (N, embed_dim), jnp.float32)
    end = jax.random.normal(k_e, (N, embed_dim), jnp.float32)

    out = distmult_forward(start, end, lin_w, lin_b, rel_w)
    out = jax.block_until_ready(out)

    ref = distmult_ref(start, end, lin_w, lin_b, rel_w)
    assert out.shape == (N, 2)
    assert jnp.allclose(out, ref, atol=1e-5, rtol=1e-5), "mismatch vs reference"

    print("KERNEL_OK")
</pallas_src>

<mosaic_0001>
module attributes {stable_mosaic.version = 11 : i64} {
  func.func @distmult_kernel(%arg0: i32, %arg1: memref<32x32xf32, #tpu.memory_space<vmem>>, %arg2: memref<1x32xf32, #tpu.memory_space<vmem>>, %arg3: memref<1x32xf32, #tpu.memory_space<vmem>>, %arg4: memref<128x32xf32, #tpu.memory_space<vmem>>, %arg5: memref<128x32xf32, #tpu.memory_space<vmem>>, %arg6: memref<1x128xf32, #tpu.memory_space<vmem>>) attributes {dimension_semantics = [#tpu.dimension_semantics<parallel>], iteration_bounds = array<i64: 1>, scalar_prefetch = 0 : i64, scratch_operands = 0 : i64, tpu.core_type = #tpu.core_type<tc>, window_params = [{pipeline_mode = #tpu.pipeline_mode<synchronous>, transform_indices = @transform_0, window_bounds = array<i64: 32, 32>}, {pipeline_mode = #tpu.pipeline_mode<synchronous>, transform_indices = @transform_1, window_bounds = array<i64: 1, 32>}, {pipeline_mode = #tpu.pipeline_mode<synchronous>, transform_indices = @transform_2, window_bounds = array<i64: 1, 32>}, {transform_indices = @transform_3, window_bounds = array<i64: 128, 32>}, {transform_indices = @transform_4, window_bounds = array<i64: 128, 32>}, {transform_indices = @transform_5, window_bounds = array<i64: 1, 128>}]} {
    %c0 = arith.constant 0 : index
    %c0_0 = arith.constant 0 : index
    %0 = vector.load %arg1[%c0, %c0_0] : memref<32x32xf32, #tpu.memory_space<vmem>>, vector<32x32xf32>
    %c0_1 = arith.constant 0 : index
    %c0_2 = arith.constant 0 : index
    %1 = vector.load %arg2[%c0_1, %c0_2] : memref<1x32xf32, #tpu.memory_space<vmem>>, vector<1x32xf32>
    %c0_3 = arith.constant 0 : index
    %c0_4 = arith.constant 0 : index
    %2 = vector.load %arg3[%c0_3, %c0_4] : memref<1x32xf32, #tpu.memory_space<vmem>>, vector<1x32xf32>
    %c0_5 = arith.constant 0 : index
    %c0_6 = arith.constant 0 : index
    %3 = vector.load %arg4[%c0_5, %c0_6] : memref<128x32xf32, #tpu.memory_space<vmem>>, vector<128x32xf32>
    %c0_7 = arith.constant 0 : index
    %c0_8 = arith.constant 0 : index
    %4 = vector.load %arg5[%c0_7, %c0_8] : memref<128x32xf32, #tpu.memory_space<vmem>>, vector<128x32xf32>
    %5 = tpu.concatenate %3, %4 in 0 : vector<128x32xf32>, vector<128x32xf32> -> vector<256x32xf32>
    %cst = arith.constant dense<0.000000e+00> : vector<256x32xf32>
    %6 = tpu.matmul %5, %0, %cst {dimension_numbers = #tpu.dot_dimension_numbers<[1], [0], [0], [1], [0, 0, 1, 1], [], []>} : vector<256x32xf32>, vector<32x32xf32>, vector<256x32xf32> -> vector<256x32xf32>
    %7 = vector.broadcast %1 : vector<1x32xf32> to vector<256x32xf32>
    %8 = arith.addf %6, %7 : vector<256x32xf32>
    %9 = math.tanh %8 : vector<256x32xf32>
    %10 = vector.extract_strided_slice %9 {offsets = [0, 0], sizes = [128, 32], strides = [1, 1]} : vector<256x32xf32> to vector<128x32xf32>
    %11 = vector.extract_strided_slice %9 {offsets = [128, 0], sizes = [128, 32], strides = [1, 1]} : vector<256x32xf32> to vector<128x32xf32>
    %12 = arith.mulf %10, %11 : vector<128x32xf32>
    %cst_9 = arith.constant dense<0.000000e+00> : vector<1x128xf32>
    %13 = tpu.matmul %2, %12, %cst_9 {dimension_numbers = #tpu.dot_dimension_numbers<[1], [1], [0], [0], [0, 0, 1, 0], [], []>} : vector<1x32xf32>, vector<128x32xf32>, vector<1x128xf32> -> vector<1x128xf32>
    %c0_10 = arith.constant 0 : index
    %c0_11 = arith.constant 0 : index
    %14 = vector.load %arg6[%c0_10, %c0_11] : memref<1x128xf32, #tpu.memory_space<vmem>>, vector<1x128xf32>
    tpu.vector_store %arg6[%c0_10, %c0_11], %13 {strides = array<i32>} : memref<1x128xf32, #tpu.memory_space<vmem>>, vector<1x128xf32>,
    return
  }
  func.func @transform_0(%arg0: i32) -> (i32, i32) {
    %c0_i32 = arith.constant 0 : i32
    %c0_i32_0 = arith.constant 0 : i32
    %c0_i32_1 = arith.constant 0 : i32
    return %c0_i32, %c0_i32_0 : i32, i32
  }
  func.func @transform_1(%arg0: i32) -> (i32, i32) {
    %c0_i32 = arith.constant 0 : i32
    %c0_i32_0 = arith.constant 0 : i32
    %c0_i32_1 = arith.constant 0 : i32
    return %c0_i32, %c0_i32_0 : i32, i32
  }
  func.func @transform_2(%arg0: i32) -> (i32, i32) {
    %c0_i32 = arith.constant 0 : i32
    %c0_i32_0 = arith.constant 0 : i32
    %c0_i32_1 = arith.constant 0 : i32
    return %c0_i32, %c0_i32_0 : i32, i32
  }
  func.func @transform_3(%arg0: i32) -> (i32, i32) {
    %c0_i32 = arith.constant 0 : i32
    %c0_i32_0 = arith.constant 0 : i32
    return %arg0, %c0_i32 : i32, i32
  }
  func.func @transform_4(%arg0: i32) -> (i32, i32) {
    %c0_i32 = arith.constant 0 : i32
    %c0_i32_0 = arith.constant 0 : i32
    return %arg0, %c0_i32 : i32, i32
  }
  func.func @transform_5(%arg0: i32) -> (i32, i32) {
    %c0_i32 = arith.constant 0 : i32
    %c0_i32_0 = arith.constant 0 : i32
    return %arg0, %c0_i32 : i32, i32
  }
}

</mosaic_0001>

<llo_original>
// kernel: tpu_custom_call.1
$region0: #{tpu_custom_call.1}
  #allocation0 [shape = 'u32[]', space=smem, size = 0x4, offset = 0x4, fixed_abs, tag = 'smem constant byte address 0x4 - core index']
  #allocation1 [shape = 'u32[144,128]{1,0:T(1,128)}', space=vmem, size = 0x12000, scoped, tag = 'internal scratch']
  %s0 = inlined_call_operand.vmem [shape: f32[32,32], index: 0, kind: input, shape index: {}]
  %s1 = inlined_call_operand.vmem [shape: f32[1,32], index: 1, kind: input, shape index: {}]
  %s2 = inlined_call_operand.vmem [shape: f32[1,32], index: 2, kind: input, shape index: {}]
  %s3 = inlined_call_operand.vmem [shape: f32[128,32], index: 3, kind: input, shape index: {}]
  %s4 = inlined_call_operand.vmem [shape: f32[128,32], index: 4, kind: input, shape index: {}]
  %s5 = inlined_call_operand.hbm [shape: f32[1,128], index: 5, kind: output, shape index: {}]
  %s6 = sld [smem:[#allocation0]]
  $region30: #{tpu_custom_call.1} parent=0
    _
  %s8 = ssub.s32 1, %s6
  %s9 = scalar_select 0, %s8, %s6
  $region1: #{tpu_custom_call.1} parent=0
    #allocation2 [shape = 'u8[512]{0}', space=vmem, size = 0x400, scoped, tag = 'output window, operand 0, single buffered']
    #allocation3 [shape = 's32[1]{0}', space=sflag, size = 0x4, scoped, tag = 'scoped memory for tpu_custom_call.1']
    %10 = vsyncpa [#allocation3], 0
    // Predicated region
    $region2: #{tpu_custom_call.1} parent=1 // pred_check
      _
    $region3: #{tpu_custom_call.1} parent=1 // pred_check_branch
      %12 = sbr.rel (0) target = $region5
    $region4: #{tpu_custom_call.1} parent=1 // pred_region
      _
    $region5: #{tpu_custom_call.1} parent=1 // pred_fallthru
      _
    // Predicated region
    $region6: #{tpu_custom_call.1} parent=1 // pred_check
      _
    $region7: #{tpu_custom_call.1} parent=1 // pred_check_branch
      %14 = sbr.rel (0) target = $region9
    $region8: #{tpu_custom_call.1} parent=1 // pred_region
      _
    $region9: #{tpu_custom_call.1} parent=1 // pred_fallthru
      _
    // Predicated region
    $region10: #{tpu_custom_call.1} parent=1 // pred_check
      _
    $region11: #{tpu_custom_call.1} parent=1 // pred_check_branch
      %16 = sbr.rel (0) target = $region13
    $region12: #{tpu_custom_call.1} parent=1 // pred_region
      _
    $region13: #{tpu_custom_call.1} parent=1 // pred_fallthru
      _
    // Predicated region
    $region14: #{tpu_custom_call.1} parent=1 // pred_check
      _
    $region15: #{tpu_custom_call.1} parent=1 // pred_check_branch
      %18 = sbr.rel (0) target = $region17
    $region16: #{tpu_custom_call.1} parent=1 // pred_region
      _
    $region17: #{tpu_custom_call.1} parent=1 // pred_fallthru
      _
    // Predicated region
    $region18: #{tpu_custom_call.1} parent=1 // pred_check
      _
    $region19: #{tpu_custom_call.1} parent=1 // pred_check_branch
      %20 = sbr.rel (0) target = $region21
    $region20: #{tpu_custom_call.1} parent=1 // pred_region
      _
    $region21: #{tpu_custom_call.1} parent=1 // pred_fallthru
      _
    %v21 = vld [vmem:[%s0] sm:$0xff]
    %v22 = vld [vmem:[%s0 + $0x8] sm:$0xff]
    %v23 = vld [vmem:[%s0 + $0x10] sm:$0xff]
    %v24 = vld [vmem:[%s0 + $0x18] sm:$0xff]
    %v25 = vld [vmem:[%s1] sm:$0x1]
    %v26 = vld [vmem:[%s2] sm:$0x1]
    %v27 = vld [vmem:[%s3] sm:$0xff]
    %v28 = vld [vmem:[%s3 + $0x8] sm:$0xff]
    %v29 = vld [vmem:[%s3 + $0x10] sm:$0xff]
    %v30 = vld [vmem:[%s3 + $0x18] sm:$0xff]
    %v31 = vld [vmem:[%s3 + $0x20] sm:$0xff]
    %v32 = vld [vmem:[%s3 + $0x28] sm:$0xff]
    %v33 = vld [vmem:[%s3 + $0x30] sm:$0xff]
    %v34 = vld [vmem:[%s3 + $0x38] sm:$0xff]
    %v35 = vld [vmem:[%s3 + $0x40] sm:$0xff]
    %v36 = vld [vmem:[%s3 + $0x48] sm:$0xff]
    %v37 = vld [vmem:[%s3 + $0x50] sm:$0xff]
    %v38 = vld [vmem:[%s3 + $0x58] sm:$0xff]
    %v39 = vld [vmem:[%s3 + $0x60] sm:$0xff]
    %v40 = vld [vmem:[%s3 + $0x68] sm:$0xff]
    %v41 = vld [vmem:[%s3 + $0x70] sm:$0xff]
    %v42 = vld [vmem:[%s3 + $0x78] sm:$0xff]
    %v43 = vld [vmem:[%s4] sm:$0xff]
    %v44 = vld [vmem:[%s4 + $0x8] sm:$0xff]
    %v45 = vld [vmem:[%s4 + $0x10] sm:$0xff]
    %v46 = vld [vmem:[%s4 + $0x18] sm:$0xff]
    %v47 = vld [vmem:[%s4 + $0x20] sm:$0xff]
    %v48 = vld [vmem:[%s4 + $0x28] sm:$0xff]
    %v49 = vld [vmem:[%s4 + $0x30] sm:$0xff]
    %v50 = vld [vmem:[%s4 + $0x38] sm:$0xff]
    %v51 = vld [vmem:[%s4 + $0x40] sm:$0xff]
    %v52 = vld [vmem:[%s4 + $0x48] sm:$0xff]
    %v53 = vld [vmem:[%s4 + $0x50] sm:$0xff]
    %v54 = vld [vmem:[%s4 + $0x58] sm:$0xff]
    %v55 = vld [vmem:[%s4 + $0x60] sm:$0xff]
    %v56 = vld [vmem:[%s4 + $0x68] sm:$0xff]
    %v57 = vld [vmem:[%s4 + $0x70] sm:$0xff]
    %v58 = vld [vmem:[%s4 + $0x78] sm:$0xff]
    %v60 = vlaneseq
    %v61 = vshrl.u32 %v60, 7
    %v62 = vsub.s32 0, %v61
    %v63 = vrot.slane %v25, %v62
    %vm65 = vcmask 261120
    %v67 = vsel %vm65, %v27, 0
    %v70 = vsel %vm65, %v28, 0
    %v73 = vsel %vm65, %v29, 0
    %v76 = vsel %vm65, %v30, 0
    %v79 = vsel %vm65, %v31, 0
    %v82 = vsel %vm65, %v32, 0
    %v85 = vsel %vm65, %v33, 0
    %v88 = vsel %vm65, %v34, 0
    %v91 = vsel %vm65, %v35, 0
    %v94 = vsel %vm65, %v36, 0
    %v97 = vsel %vm65, %v37, 0
    %v100 = vsel %vm65, %v38, 0
    %v103 = vsel %vm65, %v39, 0
    %v106 = vsel %vm65, %v40, 0
    %v109 = vsel %vm65, %v41, 0
    %v112 = vsel %vm65, %v42, 0
    %v115 = vsel %vm65, %v43, 0
    %v118 = vsel %vm65, %v44, 0
    %v121 = vsel %vm65, %v45, 0
    %v124 = vsel %vm65, %v46, 0
    %v127 = vsel %vm65, %v47, 0
    %v130 = vsel %vm65, %v48, 0
    %v133 = vsel %vm65, %v49, 0
    %v136 = vsel %vm65, %v50, 0
    %v139 = vsel %vm65, %v51, 0
    %v142 = vsel %vm65, %v52, 0
    %v145 = vsel %vm65, %v53, 0
    %v148 = vsel %vm65, %v54, 0
    %v151 = vsel %vm65, %v55, 0
    %v154 = vsel %vm65, %v56, 0
    %v157 = vsel %vm65, %v57, 0
    %v160 = vsel %vm65, %v58, 0
    %162 = vmatprep.subr.mxu0 0.0
    %163 = vmatpush1.msra.mxu0 %v21
    %164 = vmatprep.subr.mxu0 0.0
    %165 = vmatpush1.msra.mxu0 %v22
    %166 = vmatprep.subr.mxu0 0.0
    %167 = vmatpush1.msra.mxu0 %v23
    %168 = vmatprep.subr.mxu0 0.0
    %169 = vmatpush1.msra.mxu0 %v24
    %170 = vmatprep.subr.mxu0 0.0
    %171 = vmatpush1.msra.mxu0 0.0
    %172 = vmatprep.subr.mxu0 0.0
    %173 = vmatpush1.msra.mxu0 0.0
    %174 = vmatprep.subr.mxu0 0.0
    %175 = vmatpush1.msra.mxu0 0.0
    %176 = vmatprep.subr.mxu0 0.0
    %177 = vmatpush1.msra.mxu0 0.0
    %178 = vmatprep.subr.mxu0 0.0
    %179 = vmatpush1.msra.mxu0 0.0
    %180 = vmatprep.subr.mxu0 0.0
    %181 = vmatpush1.msra.mxu0 0.0
    %182 = vmatprep.subr.mxu0 0.0
    %183 = vmatpush1.msra.mxu0 0.0
    %184 = vmatprep.subr.mxu0 0.0
    %185 = vmatpush1.msra.mxu0 0.0
    %186 = vmatprep.subr.mxu0 0.0
    %187 = vmatpush1.msra.mxu0 0.0
    %188 = vmatprep.subr.mxu0 0.0
    %189 = vmatpush1.msra.mxu0 0.0
    %190 = vmatprep.subr.mxu0 0.0
    %191 = vmatpush1.msra.mxu0 0.0
    %192 = vmatprep.subr.mxu0 0.0
    %193 = vmatpush1.msra.mxu0 0.0
    %194 = vmatprep.subr.mxu0 0.0
    %195 = vmatpush1.msra.mxu0 0.0
    %196 = vmatprep.subr.mxu0 0.0
    %197 = vmatpush1.msra.mxu0 0.0
    %198 = vmatprep.subr.mxu0 0.0
    %199 = vmatpush1.msra.mxu0 0.0
    %200 = vmatprep.subr.mxu0 0.0
    %201 = vmatpush1.msra.mxu0 0.0
    %202 = vmatprep.subr.mxu0 0.0
    %203 = vmatpush1.msra.mxu0 0.0
    %204 = vmatprep.subr.mxu0 0.0
    %205 = vmatpush1.msra.mxu0 0.0
    %206 = vmatprep.subr.mxu0 0.0
    %207 = vmatpush1.msra.mxu0 0.0
    %208 = vmatprep.subr.mxu0 0.0
    %209 = vmatpush1.msra.mxu0 0.0
    %210 = vmatprep.subr.mxu0 0.0
    %211 = vmatpush1.msra.mxu0 0.0
    %212 = vmatprep.subr.mxu0 0.0
    %213 = vmatpush1.msra.mxu0 0.0
    %214 = vmatprep.subr.mxu0 0.0
    %215 = vmatpush1.msra.mxu0 0.0
    %216 = vmatprep.subr.mxu0 0.0
    %217 = vmatpush1.msra.mxu0 0.0
    %218 = vmatprep.subr.mxu0 0.0
    %219 = vmatpush1.msra.mxu0 0.0
    %220 = vmatprep.subr.mxu0 0.0
    %221 = vmatpush1.msra.mxu0 0.0
    %222 = vmatprep.subr.mxu0 0.0
    %223 = vmatpush1.msra.mxu0 0.0
    %224 = vmatprep.subr.mxu0 0.0
    %225 = vmatpush1.msra.mxu0 0.0
    %226 = vmatprep.mubr.f32.mxu0 0.0
    %227 = vmatmul.mubr.f32.gmra.mrb[0].mxu0 %v67
    %v228 = vpop.f32.mrb[0].mxu0
    %v229 = vadd.f32 %v63, %v228
    %v230 = vpop.f32.mrb[0].mxu0
    %231 = vmatprep.mubr.f32.mxu0 0.0
    %232 = vmatmul.mubr.f32.gmra.mrb[0].mxu0 %v70
    %v233 = vpop.f32.mrb[0].mxu0
    %v234 = vadd.f32 %v63, %v233
    %v235 = vpop.f32.mrb[0].mxu0
    %236 = vmatprep.mubr.f32.mxu0 0.0
    %237 = vmatmul.mubr.f32.gmra.mrb[0].mxu0 %v73
    %v238 = vpop.f32.mrb[0].mxu0
    %v239 = vadd.f32 %v63, %v238
    %v240 = vpop.f32.mrb[0].mxu0
    %241 = vmatprep.mubr.f32.mxu0 0.0
    %242 = vmatmul.mubr.f32.gmra.mrb[0].mxu0 %v76
    %v243 = vpop.f32.mrb[0].mxu0
    %v244 = vadd.f32 %v63, %v243
    %v245 = vpop.f32.mrb[0].mxu0
    %246 = vmatprep.mubr.f32.mxu0 0.0
    %247 = vmatmul.mubr.f32.gmra.mrb[0].mxu0 %v79
    %v248 = vpop.f32.mrb[0].mxu0
    %v249 = vadd.f32 %v63, %v248
    %v250 = vpop.f32.mrb[0].mxu0
    %251 = vmatprep.mubr.f32.mxu0 0.0
    %252 = vmatmul.mubr.f32.gmra.mrb[0].mxu0 %v82
    %v253 = vpop.f32.mrb[0].mxu0
    %v254 = vadd.f32 %v63, %v253
    %v255 = vpop.f32.mrb[0].mxu0
    %256 = vmatprep.mubr.f32.mxu0 0.0
    %257 = vmatmul.mubr.f32.gmra.mrb[0].mxu0 %v85
    %v258 = vpop.f32.mrb[0].mxu0
    %v259 = vadd.f32 %v63, %v258
    %v260 = vpop.f32.mrb[0].mxu0
    %261 = vmatprep.mubr.f32.mxu0 0.0
    %262 = vmatmul.mubr.f32.gmra.mrb[0].mxu0 %v88
    %v263 = vpop.f32.mrb[0].mxu0
    %v264 = vadd.f32 %v63, %v263
    %v265 = vpop.f32.mrb[0].mxu0
    %266 = vmatprep.mubr.f32.mxu0 0.0
    %267 = vmatmul.mubr.f32.gmra.mrb[0].mxu0 %v91
    %v268 = vpop.f32.mrb[0].mxu0
    %v269 = vadd.f32 %v63, %v268
    %v270 = vpop.f32.mrb[0].mxu0
    %271 = vmatprep.mubr.f32.mxu0 0.0
    %272 = vmatmul.mubr.f32.gmra.mrb[0].mxu0 %v94
    %v273 = vpop.f32.mrb[0].mxu0
    %v274 = vadd.f32 %v63, %v273
    %v275 = vpop.f32.mrb[0].mxu0
    %276 = vmatprep.mubr.f32.mxu0 0.0
    %277 = vmatmul.mubr.f32.gmra.mrb[0].mxu0 %v97
    %v278 = vpop.f32.mrb[0].mxu0
    %v279 = vadd.f32 %v63, %v278
    %v280 = vpop.f32.mrb[0].mxu0
    %281 = vmatprep.mubr.f32.mxu0 0.0
    %282 = vmatmul.mubr.f32.gmra.mrb[0].mxu0 %v100
    %v283 = vpop.f32.mrb[0].mxu0
    %v284 = vadd.f32 %v63, %v283
    %v285 = vpop.f32.mrb[0].mxu0
    %286 = vmatprep.mubr.f32.mxu0 0.0
    %287 = vmatmul.mubr.f32.gmra.mrb[0].mxu0 %v103
    %v288 = vpop.f32.mrb[0].mxu0
    %v289 = vadd.f32 %v63, %v288
    %v290 = vpop.f32.mrb[0].mxu0
    %291 = vmatprep.mubr.f32.mxu0 0.0
    %292 = vmatmul.mubr.f32.gmra.mrb[0].mxu0 %v106
    %v293 = vpop.f32.mrb[0].mxu0
    %v294 = vadd.f32 %v63, %v293
    %v295 = vpop.f32.mrb[0].mxu0
    %296 = vmatprep.mubr.f32.mxu0 0.0
    %297 = vmatmul.mubr.f32.gmra.mrb[0].mxu0 %v109
    %v298 = vpop.f32.mrb[0].mxu0
    %v299 = vadd.f32 %v63, %v298
    %v300 = vpop.f32.mrb[0].mxu0
    %301 = vmatprep.mubr.f32.mxu0 0.0
    %302 = vmatmul.mubr.f32.gmra.mrb[0].mxu0 %v112
    %v303 = vpop.f32.mrb[0].mxu0
    %v304 = vadd.f32 %v63, %v303
    %v305 = vpop.f32.mrb[0].mxu0
    %306 = vmatprep.mubr.f32.mxu0 0.0
    %307 = vmatmul.mubr.f32.gmra.mrb[0].mxu0 %v115
    %v308 = vpop.f32.mrb[0].mxu0
    %v309 = vadd.f32 %v63, %v308
    %v310 = vpop.f32.mrb[0].mxu0
    %311 = vmatprep.mubr.f32.mxu0 0.0
    %312 = vmatmul.mubr.f32.gmra.mrb[0].mxu0 %v118
    %v313 = vpop.f32.mrb[0].mxu0
    %v314 = vadd.f32 %v63, %v313
    %v315 = vpop.f32.mrb[0].mxu0
    %316 = vmatprep.mubr.f32.mxu0 0.0
    %317 = vmatmul.mubr.f32.gmra.mrb[0].mxu0 %v121
    %v318 = vpop.f32.mrb[0].mxu0
    %v319 = vadd.f32 %v63, %v318
    %v320 = vpop.f32.mrb[0].mxu0
    %321 = vmatprep.mubr.f32.mxu0 0.0
    %322 = vmatmul.mubr.f32.gmra.mrb[0].mxu0 %v124
    %v323 = vpop.f32.mrb[0].mxu0
    %v324 = vadd.f32 %v63, %v323
    %v325 = vpop.f32.mrb[0].mxu0
    %326 = vmatprep.mubr.f32.mxu0 0.0
    %327 = vmatmul.mubr.f32.gmra.mrb[0].mxu0 %v127
    %v328 = vpop.f32.mrb[0].mxu0
    %v329 = vadd.f32 %v63, %v328
    %v330 = vpop.f32.mrb[0].mxu0
    %331 = vmatprep.mubr.f32.mxu0 0.0
    %332 = vmatmul.mubr.f32.gmra.mrb[0].mxu0 %v130
    %v333 = vpop.f32.mrb[0].mxu0
    %v334 = vadd.f32 %v63, %v333
    %v335 = vpop.f32.mrb[0].mxu0
    %336 = vmatprep.mubr.f32.mxu0 0.0
    %337 = vmatmul.mubr.f32.gmra.mrb[0].mxu0 %v133
    %v338 = vpop.f32.mrb[0].mxu0
    %v339 = vadd.f32 %v63, %v338
    %v340 = vpop.f32.mrb[0].mxu0
    %341 = vmatprep.mubr.f32.mxu0 0.0
    %342 = vmatmul.mubr.f32.gmra.mrb[0].mxu0 %v136
    %v343 = vpop.f32.mrb[0].mxu0
    %v344 = vadd.f32 %v63, %v343
    %v345 = vpop.f32.mrb[0].mxu0
    %346 = vmatprep.mubr.f32.mxu0 0.0
    %347 = vmatmul.mubr.f32.gmra.mrb[0].mxu0 %v139
    %v348 = vpop.f32.mrb[0].mxu0
    %v349 = vadd.f32 %v63, %v348
    %v350 = vpop.f32.mrb[0].mxu0
    %351 = vmatprep.mubr.f32.mxu0 0.0
    %352 = vmatmul.mubr.f32.gmra.mrb[0].mxu0 %v142
    %v353 = vpop.f32.mrb[0].mxu0
    %v354 = vadd.f32 %v63, %v353
    %v355 = vpop.f32.mrb[0].mxu0
    %356 = vmatprep.mubr.f32.mxu0 0.0
    %357 = vmatmul.mubr.f32.gmra.mrb[0].mxu0 %v145
    %v358 = vpop.f32.mrb[0].mxu0
    %v359 = vadd.f32 %v63, %v358
    %v360 = vpop.f32.mrb[0].mxu0
    %361 = vmatprep.mubr.f32.mxu0 0.0
    %362 = vmatmul.mubr.f32.gmra.mrb[0].mxu0 %v148
    %v363 = vpop.f32.mrb[0].mxu0
    %v364 = vadd.f32 %v63, %v363
    %v365 = vpop.f32.mrb[0].mxu0
    %366 = vmatprep.mubr.f32.mxu0 0.0
    %367 = vmatmul.mubr.f32.gmra.mrb[0].mxu0 %v151
    %v368 = vpop.f32.mrb[0].mxu0
    %v369 = vadd.f32 %v63, %v368
    %v370 = vpop.f32.mrb[0].mxu0
    %371 = vmatprep.mubr.f32.mxu0 0.0
    %372 = vmatmul.mubr.f32.gmra.mrb[0].mxu0 %v154
    %v373 = vpop.f32.mrb[0].mxu0
    %v374 = vadd.f32 %v63, %v373
    %v375 = vpop.f32.mrb[0].mxu0
    %376 = vmatprep.mubr.f32.mxu0 0.0
    %377 = vmatmul.mubr.f32.gmra.mrb[0].mxu0 %v157
    %v378 = vpop.f32.mrb[0].mxu0
    %v379 = vadd.f32 %v63, %v378
    %v380 = vpop.f32.mrb[0].mxu0
    %381 = vmatprep.mubr.f32.mxu0 0.0
    %382 = vmatmul.mubr.f32.gmra.mrb[0].mxu0 %v160
    %v383 = vpop.f32.mrb[0].mxu0
    %v384 = vadd.f32 %v63, %v383
    %v385 = vpop.f32.mrb[0].mxu0
    %386 = vdwg.mxu0
    %v387 = vtanh.pop %v229
    %v388 = vtanh.pop %v234
    %v389 = vtanh.pop %v239
    %v390 = vtanh.pop %v244
    %v391 = vtanh.pop %v249
    %v392 = vtanh.pop %v254
    %v393 = vtanh.pop %v259
    %v394 = vtanh.pop %v264
    %v395 = vtanh.pop %v269
    %v396 = vtanh.pop %v274
    %v397 = vtanh.pop %v279
    %v398 = vtanh.pop %v284
    %v399 = vtanh.pop %v289
    %v400 = vtanh.pop %v294
    %v401 = vtanh.pop %v299
    %v402 = vtanh.pop %v304
    %v403 = vtanh.pop %v309
    %v404 = vtanh.pop %v314
    %v405 = vtanh.pop %v319
    %v406 = vtanh.pop %v324
    %v407 = vtanh.pop %v329
    %v408 = vtanh.pop %v334
    %v409 = vtanh.pop %v339
    %v410 = vtanh.pop %v344
    %v411 = vtanh.pop %v349
    %v412 = vtanh.pop %v354
    %v413 = vtanh.pop %v359
    %v414 = vtanh.pop %v364
    %v415 = vtanh.pop %v369
    %v416 = vtanh.pop %v374
    %v417 = vtanh.pop %v379
    %v418 = vtanh.pop %v384
    %v419 = vmul.f32 %v387, %v403
    %v420 = vmul.f32 %v388, %v404
    %v421 = vmul.f32 %v389, %v405
    %v422 = vmul.f32 %v390, %v406
    %v423 = vmul.f32 %v391, %v407
    %v424 = vmul.f32 %v392, %v408
    %v425 = vmul.f32 %v393, %v409
    %v426 = vmul.f32 %v394, %v410
    %v427 = vmul.f32 %v395, %v411
    %v428 = vmul.f32 %v396, %v412
    %v429 = vmul.f32 %v397, %v413
    %v430 = vmul.f32 %v398, %v414
    %v431 = vmul.f32 %v399, %v415
    %v432 = vmul.f32 %v400, %v416
    %v433 = vmul.f32 %v401, %v417
    %v434 = vmul.f32 %v402, %v418
    %v436 = vsel %vm65, %v26, 0
    %v439 = vsel %vm65, %v419, 0
    %v442 = vsel %vm65, %v420, 0
    %v445 = vsel %vm65, %v421, 0
    %v448 = vsel %vm65, %v422, 0
    %v451 = vsel %vm65, %v423, 0
    %v454 = vsel %vm65, %v424, 0
    %v457 = vsel %vm65, %v425, 0
    %v460 = vsel %vm65, %v426, 0
    %v463 = vsel %vm65, %v427, 0
    %v466 = vsel %vm65, %v428, 0
    %v469 = vsel %vm65, %v429, 0
    %v472 = vsel %vm65, %v430, 0
    %v475 = vsel %vm65, %v431, 0
    %v478 = vsel %vm65, %v432, 0
    %v481 = vsel %vm65, %v433, 0
    %v484 = vsel %vm65, %v434, 0
    %486 = vmatprep.subr.mxu0 0.0
    %487 = vmatpush1.xpose.msra.mxu0 %v439
    %488 = vmatprep.subr.mxu0 0.0
    %489 = vmatpush1.xpose.msra.mxu0 %v442
    %490 = vmatprep.subr.mxu0 0.0
    %491 = vmatpush1.xpose.msra.mxu0 %v445
    %492 = vmatprep.subr.mxu0 0.0
    %493 = vmatpush1.xpose.msra.mxu0 %v448
    %494 = vmatprep.subr.mxu0 0.0
    %495 = vmatpush1.xpose.msra.mxu0 %v451
    %496 = vmatprep.subr.mxu0 0.0
    %497 = vmatpush1.xpose.msra.mxu0 %v454
    %498 = vmatprep.subr.mxu0 0.0
    %499 = vmatpush1.xpose.msra.mxu0 %v457
    %500 = vmatprep.subr.mxu0 0.0
    %501 = vmatpush1.xpose.msra.mxu0 %v460
    %502 = vmatprep.subr.mxu0 0.0
    %503 = vmatpush1.xpose.msra.mxu0 %v463
    %504 = vmatprep.subr.mxu0 0.0
    %505 = vmatpush1.xpose.msra.mxu0 %v466
    %506 = vmatprep.subr.mxu0 0.0
    %507 = vmatpush1.xpose.msra.mxu0 %v469
    %508 = vmatprep.subr.mxu0 0.0
    %509 = vmatpush1.xpose.msra.mxu0 %v472
    %510 = vmatprep.subr.mxu0 0.0
    %511 = vmatpush1.xpose.msra.mxu0 %v475
    %512 = vmatprep.subr.mxu0 0.0
    %513 = vmatpush1.xpose.msra.mxu0 %v478
    %514 = vmatprep.subr.mxu0 0.0
    %515 = vmatpush1.xpose.msra.mxu0 %v481
    %516 = vmatprep.subr.mxu0 0.0
    %517 = vmatpush1.xpose.msra.mxu0 %v484
    %518 = vmatprep.subr.mxu0 0.0
    %519 = vmatpush1.xpose.msra.mxu0 0.0
    %520 = vmatprep.subr.mxu0 0.0
    %521 = vmatpush1.xpose.msra.mxu0 0.0
    %522 = vmatprep.subr.mxu0 0.0
    %523 = vmatpush1.xpose.msra.mxu0 0.0
    %524 = vmatprep.subr.mxu0 0.0
    %525 = vmatpush1.xpose.msra.mxu0 0.0
    %526 = vmatprep.subr.mxu0 0.0
    %527 = vmatpush1.xpose.msra.mxu0 0.0
    %528 = vmatprep.subr.mxu0 0.0
    %529 = vmatpush1.xpose.msra.mxu0 0.0
    %530 = vmatprep.subr.mxu0 0.0
    %531 = vmatpush1.xpose.msra.mxu0 0.0
    %532 = vmatprep.subr.mxu0 0.0
    %533 = vmatpush1.xpose.msra.mxu0 0.0
    %534 = vmatprep.subr.mxu0 0.0
    %535 = vmatpush1.xpose.msra.mxu0 0.0
    %536 = vmatprep.subr.mxu0 0.0
    %537 = vmatpush1.xpose.msra.mxu0 0.0
    %538 = vmatprep.subr.mxu0 0.0
    %539 = vmatpush1.xpose.msra.mxu0 0.0
    %540 = vmatprep.subr.mxu0 0.0
    %541 = vmatpush1.xpose.msra.mxu0 0.0
    %542 = vmatprep.subr.mxu0 0.0
    %543 = vmatpush1.xpose.msra.mxu0 0.0
    %544 = vmatprep.subr.mxu0 0.0
    %545 = vmatpush1.xpose.msra.mxu0 0.0
    %546 = vmatprep.subr.mxu0 0.0
    %547 = vmatpush1.xpose.msra.mxu0 0.0
    %548 = vmatprep.subr.mxu0 0.0
    %549 = vmatpush1.xpose.msra.mxu0 0.0
    %550 = vmatprep.mubr.f32.mxu0 0.0
    %551 = vmatmul.mubr.f32.gmra.mrb[0].mxu0 %v436
    %v552 = vpop.f32.mrb[0].mxu0
    %v553 = vadd.f32 0.0, %v552
    %v554 = vpop.f32.mrb[0].mxu0
    %555 = vdwg.mxu0
    %556 = vst [vmem:[#allocation2] sm:$0x1] %v553
    // Predicated region
    $region22: #{tpu_custom_call.1} parent=1 // pred_check
      _
    $region23: #{tpu_custom_call.1} parent=1 // pred_check_branch
      %558 = sbr.rel (0) target = $region25
    $region24: #{tpu_custom_call.1} parent=1 // pred_region
      %s560 = ssub.s32 16, 16
      %561 = vsyncadd [#allocation3], %s560
      %s563 = sshll.u32 [#allocation2], 4
      %s564 = int_to_ptr.vmem [resolvable:$true] %s563
      %566 = dma.vmem_to_hbm [thread:$0]  %s564, 16, %s5, [#allocation3]
    $region25: #{tpu_custom_call.1} parent=1 // pred_fallthru
      _
    // Predicated region
    $region26: #{tpu_custom_call.1} parent=1 // pred_check
      _
    $region27: #{tpu_custom_call.1} parent=1 // pred_check_branch
      %568 = sbr.rel (0) target = $region29
    $region28: #{tpu_custom_call.1} parent=1 // pred_region
      %569 = dma.done [#allocation3], 16
    $region29: #{tpu_custom_call.1} parent=1 // pred_fallthru
      _
    %570 = vsyncpa [#allocation3], 1

</llo_original>
